<compile_context>
chip_gen: v7x
topology: tpu7x:2x2x1
jax: 0.10.0
libtpu: 0.0.40
codegen_flags: <defaults>
</compile_context>

<pallas_src>
import math

import jax
import jax.numpy as jnp
from jax.experimental import pallas as pl
from jax.experimental.pallas import tpu as pltpu


def _normalize_kernel(x_ref, mean_ref, inv_std_ref, o_ref):
    # (x - mean) * inv_std, computed in f32, sublane-broadcast of the [1, L]
    # mean / inv_std rows over the tile's rows.
    x = x_ref[...].astype(jnp.float32)
    o_ref[...] = ((x - mean_ref[...]) * inv_std_ref[...]).astype(o_ref.dtype)


def normalize(x, mean, std):
    """x: [N, C, H, W]; mean, std: 1-D of length W (trailing-dim broadcast)."""
    n, c, h, w = x.shape
    rows = n * c * h
    out_dtype = x.dtype

    # Precompute reciprocal on the tiny 1-D vector (f32, like PyTorch buffers).
    mean_f32 = mean.astype(jnp.float32)
    inv_std_f32 = 1.0 / std.astype(jnp.float32)

    # ---- lane-dense fold -------------------------------------------------
    # Fold T rows into the lane axis so the trailing dim is a multiple of 128.
    t = 128 // math.gcd(w, 128)
    if t > 1 and rows % t != 0:
        t = 1  # fallback: shapes that don't divide cleanly keep the plain view
    rows_f = rows // t
    lanes = t * w

    x2d = x.reshape(rows_f, lanes)
    mean_row = jnp.tile(mean_f32, t).reshape(1, lanes)
    inv_std_row = jnp.tile(inv_std_f32, t).reshape(1, lanes)

    # ---- rows tiling for auto double-buffering ----------------------------
    # Keep each x/out tile around <= 2 MiB so 2x(in) + 2x(out) buffers stay
    # well under the smallest default scoped-VMEM budget (16 MiB on v5e).
    itemsize = jnp.dtype(out_dtype).itemsize
    sublane_mult = 16 if itemsize == 2 else 8
    target_tile_bytes = 2 * 1024 * 1024
    bytes_per_row = lanes * max(itemsize, 4)  # f32 compute path upper bound
    tile_r = max(sublane_mult, target_tile_bytes // max(bytes_per_row, 1))
    if tile_r >= rows_f:
        tile_r = rows_f  # full extent: always a legal block
    else:
        tile_r = max(sublane_mult, (tile_r // sublane_mult) * sublane_mult)

    grid = (pl.cdiv(rows_f, tile_r),)

    out2d = pl.pallas_call(
        _normalize_kernel,
        out_shape=jax.ShapeDtypeStruct((rows_f, lanes), out_dtype),
        grid_spec=pltpu.PrefetchScalarGridSpec(
            num_scalar_prefetch=0,
            grid=grid,
            in_specs=[
                pl.BlockSpec((tile_r, lanes), lambda i: (i, 0)),  # x tile
                pl.BlockSpec((1, lanes), lambda i: (0, 0)),       # mean (resident)
                pl.BlockSpec((1, lanes), lambda i: (0, 0)),       # 1/std (resident)
            ],
            out_specs=pl.BlockSpec((tile_r, lanes), lambda i: (i, 0)),
        ),
        compiler_params=pltpu.CompilerParams(
            # Independent elementwise tiles -> shard across TCs on v7x.
            dimension_semantics=("parallel",),
        ),
    )(x2d, mean_row, inv_std_row)

    return out2d.reshape(n, c, h, w)


if __name__ == "__main__":
    key = jax.random.PRNGKey(0)
    N, C, H, W = 2, 4, 16, 16

    kx, km = jax.random.split(key)
    x = jax.random.normal(kx, (N, C, H, W), dtype=jnp.float32)

    # Deterministic "buffers" (length W, matching the trailing-dim broadcast
    # that the PyTorch forward as written actually performs).
    mean = jnp.linspace(-0.5, 0.5, W, dtype=jnp.float32)
    std = jnp.linspace(0.5, 1.5, W, dtype=jnp.float32)

    out = normalize(x, mean, std)
    out = jax.block_until_ready(out)

    # Reference check in plain JAX (same broadcasting semantics).
    ref = (x - mean) / std
    assert out.shape == x.shape
    assert jnp.allclose(out, ref, atol=1e-5, rtol=1e-5)

    print("KERNEL_OK")
</pallas_src>

<mosaic_0001>
module attributes {stable_mosaic.version = 11 : i64} {
  func.func @_normalize_kernel(%arg0: i32, %arg1: memref<16x128xf32, #tpu.memory_space<vmem>>, %arg2: memref<1x128xf32, #tpu.memory_space<vmem>>, %arg3: memref<1x128xf32, #tpu.memory_space<vmem>>, %arg4: memref<16x128xf32, #tpu.memory_space<vmem>>) attributes {dimension_semantics = [#tpu.dimension_semantics<parallel>], iteration_bounds = array<i64: 1>, scalar_prefetch = 0 : i64, scratch_operands = 0 : i64, tpu.core_type = #tpu.core_type<tc>, window_params = [{transform_indices = @transform_0, window_bounds = array<i64: 16, 128>}, {pipeline_mode = #tpu.pipeline_mode<synchronous>, transform_indices = @transform_1, window_bounds = array<i64: 1, 128>}, {pipeline_mode = #tpu.pipeline_mode<synchronous>, transform_indices = @transform_2, window_bounds = array<i64: 1, 128>}, {transform_indices = @transform_3, window_bounds = array<i64: 16, 128>}]} {
    %c0 = arith.constant 0 : index
    %c0_0 = arith.constant 0 : index
    %0 = vector.load %arg1[%c0, %c0_0] : memref<16x128xf32, #tpu.memory_space<vmem>>, vector<16x128xf32>
    %c0_1 = arith.constant 0 : index
    %c0_2 = arith.constant 0 : index
    %1 = vector.load %arg2[%c0_1, %c0_2] : memref<1x128xf32, #tpu.memory_space<vmem>>, vector<1x128xf32>
    %2 = vector.broadcast %1 : vector<1x128xf32> to vector<16x128xf32>
    %3 = arith.subf %0, %2 : vector<16x128xf32>
    %c0_3 = arith.constant 0 : index
    %c0_4 = arith.constant 0 : index
    %4 = vector.load %arg3[%c0_3, %c0_4] : memref<1x128xf32, #tpu.memory_space<vmem>>, vector<1x128xf32>
    %5 = vector.broadcast %4 : vector<1x128xf32> to vector<16x128xf32>
    %6 = arith.mulf %3, %5 : vector<16x128xf32>
    %c0_5 = arith.constant 0 : index
    %c0_6 = arith.constant 0 : index
    %7 = vector.load %arg4[%c0_5, %c0_6] : memref<16x128xf32, #tpu.memory_space<vmem>>, vector<16x128xf32>
    tpu.vector_store %arg4[%c0_5, %c0_6], %6 {strides = array<i32>} : memref<16x128xf32, #tpu.memory_space<vmem>>, vector<16x128xf32>,
    return
  }
  func.func @transform_0(%arg0: i32) -> (i32, i32) {
    %c0_i32 = arith.constant 0 : i32
    %c0_i32_0 = arith.constant 0 : i32
    return %arg0, %c0_i32 : i32, i32
  }
  func.func @transform_1(%arg0: i32) -> (i32, i32) {
    %c0_i32 = arith.constant 0 : i32
    %c0_i32_0 = arith.constant 0 : i32
    %c0_i32_1 = arith.constant 0 : i32
    return %c0_i32, %c0_i32_0 : i32, i32
  }
  func.func @transform_2(%arg0: i32) -> (i32, i32) {
    %c0_i32 = arith.constant 0 : i32
    %c0_i32_0 = arith.constant 0 : i32
    %c0_i32_1 = arith.constant 0 : i32
    return %c0_i32, %c0_i32_0 : i32, i32
  }
  func.func @transform_3(%arg0: i32) -> (i32, i32) {
    %c0_i32 = arith.constant 0 : i32
    %c0_i32_0 = arith.constant 0 : i32
    return %arg0, %c0_i32 : i32, i32
  }
}

</mosaic_0001>

<llo_original>
// kernel: tpu_custom_call.1
$region0: #{tpu_custom_call.1}
  #allocation0 [shape = 'u32[]', space=smem, size = 0x4, offset = 0x4, fixed_abs, tag = 'smem constant byte address 0x4 - core index']
  #allocation1 [shape = 'u32[144,128]{1,0:T(1,128)}', space=vmem, size = 0x12000, scoped, tag = 'internal scratch']
  %s0 = inlined_call_operand.hbm [shape: f32[16,128], index: 0, kind: input, shape index: {}]
  %s1 = inlined_call_operand.vmem [shape: f32[1,128], index: 1, kind: input, shape index: {}]
  %s2 = inlined_call_operand.vmem [shape: f32[1,128], index: 2, kind: input, shape index: {}]
  %s3 = inlined_call_operand.hbm [shape: f32[16,128], index: 3, kind: output, shape index: {}]
  %s4 = sld [smem:[#allocation0]]
  $region26: #{tpu_custom_call.1} parent=0
    _
  %s6 = ssub.s32 1, %s4
  %s7 = scalar_select 0, %s6, %s4
  $region1: #{tpu_custom_call.1} parent=0
    #allocation2 [shape = 'u8[8192]{0}', space=vmem, size = 0x2000, scoped, tag = 'input window, operand 0, single buffered']
    #allocation3 [shape = 's32[1]{0}', space=sflag, size = 0x4, scoped, tag = 'scoped memory for tpu_custom_call.1']
    #allocation4 [shape = 's32[1]{0}', space=sflag, size = 0x4, scoped, tag = 'scoped memory for tpu_custom_call.1']
    #allocation5 [shape = 'u8[8192]{0}', space=vmem, size = 0x2000, scoped, tag = 'output window, operand 0, single buffered']
    %8 = vsyncpa [#allocation3], 0
    %9 = vsyncpa [#allocation4], 0
    // Predicated region
    $region2: #{tpu_custom_call.1} parent=1 // pred_check
      _
    $region3: #{tpu_custom_call.1} parent=1 // pred_check_branch
      %11 = sbr.rel (0) target = $region5
    $region4: #{tpu_custom_call.1} parent=1 // pred_region
      %s13 = ssub.s32 256, 256
      %14 = vsyncadd [#allocation3], %s13
      %s15 = sshll.u32 [#allocation2], 4
      %s16 = int_to_ptr.vmem [resolvable:$true] %s15
      %21 = dma.hbm_to_vmem [thread:$0]  %s0, 256, %s16, [#allocation3], 128, 128, 8
    $region5: #{tpu_custom_call.1} parent=1 // pred_fallthru
      _
    // Predicated region
    $region6: #{tpu_custom_call.1} parent=1 // pred_check
      _
    $region7: #{tpu_custom_call.1} parent=1 // pred_check_branch
      %23 = sbr.rel (0) target = $region9
    $region8: #{tpu_custom_call.1} parent=1 // pred_region
      _
    $region9: #{tpu_custom_call.1} parent=1 // pred_fallthru
      _
    // Predicated region
    $region10: #{tpu_custom_call.1} parent=1 // pred_check
      _
    $region11: #{tpu_custom_call.1} parent=1 // pred_check_branch
      %25 = sbr.rel (0) target = $region13
    $region12: #{tpu_custom_call.1} parent=1 // pred_region
      _
    $region13: #{tpu_custom_call.1} parent=1 // pred_fallthru
      _
    // Predicated region
    $region14: #{tpu_custom_call.1} parent=1 // pred_check
      _
    $region15: #{tpu_custom_call.1} parent=1 // pred_check_branch
      %27 = sbr.rel (0) target = $region17
    $region16: #{tpu_custom_call.1} parent=1 // pred_region
      %28 = dma.done [#allocation3], 256
    $region17: #{tpu_custom_call.1} parent=1 // pred_fallthru
      _
    %v29 = vld [vmem:[#allocation2] sm:$0xff]
    %v30 = vld [vmem:[#allocation2 + $0x8] sm:$0xff]
    %v31 = vld [vmem:[%s1] sm:$0x1]
    %v33 = vlaneseq
    %v34 = vshrl.u32 %v33, 7
    %v35 = vsub.s32 0, %v34
    %v36 = vrot.slane %v31, %v35
    %v38 = vsub.f32 %v29, %v36
    %v39 = vsub.f32 %v30, %v36
    %v40 = vld [vmem:[%s2] sm:$0x1]
    %v42 = vlaneseq
    %v43 = vshrl.u32 %v42, 7
    %v44 = vsub.s32 0, %v43
    %v45 = vrot.slane %v40, %v44
    %v47 = vmul.f32 %v38, %v45
    %v48 = vmul.f32 %v39, %v45
    %49 = vst [vmem:[#allocation5] sm:$0xff] %v47
    %50 = vst [vmem:[#allocation5 + $0x8] sm:$0xff] %v48
    // Predicated region
    $region18: #{tpu_custom_call.1} parent=1 // pred_check
      _
    $region19: #{tpu_custom_call.1} parent=1 // pred_check_branch
      %52 = sbr.rel (0) target = $region21
    $region20: #{tpu_custom_call.1} parent=1 // pred_region
      %s54 = ssub.s32 256, 256
      %55 = vsyncadd [#allocation4], %s54
      %s56 = sshll.u32 [#allocation5], 4
      %s57 = int_to_ptr.vmem [resolvable:$true] %s56
      %62 = dma.vmem_to_hbm [thread:$0]  %s57, 256, %s3, [#allocation4], 128, 128, 8
    $region21: #{tpu_custom_call.1} parent=1 // pred_fallthru
      _
    // Predicated region
    $region22: #{tpu_custom_call.1} parent=1 // pred_check
      _
    $region23: #{tpu_custom_call.1} parent=1 // pred_check_branch
      %64 = sbr.rel (0) target = $region25
    $region24: #{tpu_custom_call.1} parent=1 // pred_region
      %65 = dma.done [#allocation4], 256
    $region25: #{tpu_custom_call.1} parent=1 // pred_fallthru
      _
    %66 = vsyncpa [#allocation3], 1
    %67 = vsyncpa [#allocation4], 1

</llo_original>
